<compile_context>
chip_gen: v5e
topology: v5e:2x2
jax: 0.10.0
libtpu: 0.0.40
codegen_flags: <defaults>
</compile_context>

<pallas_src>
import functools

import numpy as np
import jax
import jax.numpy as jnp
from jax.experimental import pallas as pl
from jax.experimental.pallas import tpu as pltpu


# ----------------------------------------------------------------------------
# Packing (bit layout identical to Quant3Linear.pack), host-side numpy.
# ----------------------------------------------------------------------------
def pack3(intweight: np.ndarray) -> np.ndarray:
    """intweight: (infeatures, outfeatures) uint32 with values in [0, 8)."""
    K, N = intweight.shape
    assert K % 32 == 0
    qweight = np.zeros((K // 32 * 3, N), dtype=np.uint32)
    i = 0
    row = 0
    while row < qweight.shape[0]:
        for j in range(i, i + 10):
            qweight[row] |= intweight[j] << (3 * (j - i))
        i += 10
        qweight[row] |= intweight[i] << 30
        row += 1
        qweight[row] |= (intweight[i] >> 2) & 1
        i += 1
        for j in range(i, i + 10):
            qweight[row] |= intweight[j] << (3 * (j - i) + 1)
        i += 10
        qweight[row] |= intweight[i] << 31
        row += 1
        qweight[row] |= (intweight[i] >> 1) & 3
        i += 1
        for j in range(i, i + 10):
            qweight[row] |= intweight[j] << (3 * (j - i) + 2)
        i += 10
        row += 1
    return qweight.astype(np.int32)


# ----------------------------------------------------------------------------
# One-time (load-time) repack for TPU: de-interleave (3G, N) -> (3, G, N) slabs.
# ----------------------------------------------------------------------------
def repack_qweight(qweight, infeatures):
    G = infeatures // 32
    N = qweight.shape[-1]
    # row 3g + r of the GPTQ layout  ->  qw3[r, g, :]
    return jnp.asarray(qweight).reshape(G, 3, N).transpose(1, 0, 2)


# ----------------------------------------------------------------------------
# Pallas kernel: vectorized 3-bit unpack on (Gc, TN) slabs, matvec, epilogue.
# ----------------------------------------------------------------------------
def _quant3_matvec_kernel(x_ref, qw_ref, s_ref, b_ref, o_ref, acc_ref, *,
                          compute_dtype):
    # x_ref : (1, 1, 32*Gc) f32     position-major x chunk
    # qw_ref: (3, Gc, TN)   int32   packed rows (r0/r1/r2 slabs) for this chunk/tile
    # s_ref : (1, TN)       f32     scales
    # b_ref : (1, TN)       f32     effective bias = bias - zeros * sum(x)
    # o_ref : (1, TN)       f32
    # acc_ref: (1, TN)      f32     accumulator across K chunks
    c = pl.program_id(1)

    @pl.when(c == 0)
    def _init():
        acc_ref[...] = jnp.zeros_like(acc_ref)

    r0 = qw_ref[0]                      # (Gc, TN) int32
    r1 = qw_ref[1]
    r2 = qw_ref[2]

    # Unpack all 32 positions of each 32-feature group as full (Gc, TN) slabs.
    # Arithmetic >> on int32 is fine: every result is masked (&7 / &3 / &1).
    vals = []
    for p in range(10):                               # positions 0..9   (bits 0..29 of r0)
        vals.append((r0 >> (3 * p)) & 7)
    vals.append(((r0 >> 30) & 3) | ((r1 & 1) << 2))   # position 10 (straddles r0/r1)
    for p in range(10):                               # positions 11..20 (bits 1..30 of r1)
        vals.append((r1 >> (3 * p + 1)) & 7)
    vals.append(((r1 >> 31) & 1) | ((r2 & 3) << 1))   # position 21 (straddles r1/r2)
    for p in range(10):                               # positions 22..31 (bits 2..31 of r2)
        vals.append((r2 >> (3 * p + 2)) & 7)

    # Position-major (p-major, group-minor) layout; matches the wrapper's x permutation,
    # so this is a pure block concatenation (no interleave).
    q = jnp.concatenate(vals, axis=0)                 # (32*Gc, TN) int32
    q = q.astype(jnp.float32).astype(compute_dtype)

    x = x_ref[0].astype(compute_dtype)                # (1, 32*Gc)
    acc_ref[...] += jnp.dot(x, q, preferred_element_type=jnp.float32)

    @pl.when(c == pl.num_programs(1) - 1)
    def _finalize():
        o_ref[...] = s_ref[...] * acc_ref[...] + b_ref[...]


def _choose_tile_n(N, tile_n):
    for cand in (tile_n, 512, 256, 128):
        if cand <= N and N % cand == 0:
            return cand
    raise ValueError(
        f"outfeatures={N} must be a multiple of 128")  # TODO(synk): pad ragged N


def _choose_group_chunk(G):
    if G % 8 == 0:
        for cand in (32, 16, 8):                      # 1024 / 512 / 256 in-features/chunk
            if G % cand == 0:
                return cand
    return G                                          # small / odd G: one chunk


def _quant3_matvec(x2d, qw3, scales2d, beff2d, *, compute_dtype=jnp.float32,
                   tile_n=512):
    # x2d: (1, K) f32 ; qw3: (3, G, N) int32 ; scales2d/beff2d: (1, N) f32
    K = x2d.shape[1]
    _, G, N = qw3.shape
    assert K == 32 * G

    tile_n = _choose_tile_n(N, tile_n)
    gc = _choose_group_chunk(G)
    n_chunks = G // gc

    # Position-major x per K-chunk: x_pm[c, 0, p*gc + g] = x[32*(c*gc + g) + p]
    x_pm = x2d.reshape(n_chunks, gc, 32).transpose(0, 2, 1).reshape(
        n_chunks, 1, 32 * gc)

    kernel = functools.partial(_quant3_matvec_kernel, compute_dtype=compute_dtype)

    cost = pl.CostEstimate(
        flops=2 * K * N,
        transcendentals=0,
        bytes_accessed=int(qw3.size) * 4 + (K + 3 * N) * 4,
    )

    return pl.pallas_call(
        kernel,
        out_shape=jax.ShapeDtypeStruct((1, N), jnp.float32),
        grid=(N // tile_n, n_chunks),
        in_specs=[
            pl.BlockSpec((1, 1, 32 * gc), lambda j, c: (c, 0, 0)),
            pl.BlockSpec((3, gc, tile_n), lambda j, c: (0, c, j)),
            pl.BlockSpec((1, tile_n), lambda j, c: (0, j)),
            pl.BlockSpec((1, tile_n), lambda j, c: (0, j)),
        ],
        out_specs=pl.BlockSpec((1, tile_n), lambda j, c: (0, j)),
        scratch_shapes=[pltpu.VMEM((1, tile_n), jnp.float32)],
        compiler_params=pltpu.CompilerParams(
            dimension_semantics=("parallel", "arbitrary"),
            vmem_limit_bytes=32 * 1024 * 1024),
        cost_estimate=cost,
    )(x_pm, qw3, scales2d, beff2d)


def quant3linear_forward(x, qweight, scales, zeros, bias, *, faster=False,
                         qweight_repacked=None):
    """Forward pass of Quant3Linear.

    faster=False : f32 compute (matches the module's vecquant3matmul path).
    faster=True  : bf16 compute (TPU analogue of the half-precision `faster` path).
    qweight_repacked: optional (3, G, N) output of repack_qweight() (one-time repack).
    """
    if x.shape[-1] != x.size:
        raise ValueError("Only supports a single token currently.")
    K = x.shape[-1]
    N = bias.shape[0]
    dtype = x.dtype

    x2d = x.reshape(1, K).astype(jnp.float32)
    if qweight_repacked is None:
        qweight_repacked = repack_qweight(qweight, K)

    # Fold the zero-point correction into an effective bias (hoists the cross-lane
    # reduction and one input stream out of the kernel).
    xsum = jnp.sum(x2d)
    beff = (bias.astype(jnp.float32).reshape(-1)
            - zeros.astype(jnp.float32).reshape(-1) * xsum).reshape(1, N)

    y = _quant3_matvec(
        x2d,
        qweight_repacked,
        scales.astype(jnp.float32).reshape(1, N),
        beff,
        compute_dtype=jnp.bfloat16 if faster else jnp.float32,
    )

    outshape = list(x.shape)
    outshape[-1] = N
    return y.astype(dtype).reshape(outshape)


# ----------------------------------------------------------------------------
# Self-test
# ----------------------------------------------------------------------------
if __name__ == "__main__":
    def run_case(key, infeatures, outfeatures, faster, rtol, atol):
        k1, k2, k3, k4, k5 = jax.random.split(key, 5)
        intweight = jax.random.randint(k1, (infeatures, outfeatures), 0, 8,
                                       dtype=jnp.int32)
        qweight = jnp.asarray(pack3(np.asarray(intweight).astype(np.uint32)))
        scales = jax.random.uniform(k2, (outfeatures, 1), minval=0.5, maxval=1.5)
        zero_pts = jax.random.randint(k3, (outfeatures, 1), 0, 8).astype(jnp.float32)
        zeros = zero_pts * scales                                 # as in pack()
        bias = jax.random.normal(k4, (outfeatures,), dtype=jnp.float32)
        x = jax.random.normal(k5, (1, 1, infeatures), dtype=jnp.float32)

        # One-time, load-time repack (de-interleave packed rows into slabs).
        qweight_repacked = repack_qweight(qweight, infeatures)

        y = quant3linear_forward(x, qweight, scales, zeros, bias,
                                 faster=faster, qweight_repacked=qweight_repacked)
        y = jax.block_until_ready(y)
        assert y.shape == (1, 1, outfeatures)

        # Pure-JAX reference: y = bias + x @ (scales * Q - zeros)
        w_deq = (scales.reshape(1, outfeatures) * intweight.astype(jnp.float32)
                 - zeros.reshape(1, outfeatures))                 # (K, N)
        y_ref = bias + x.reshape(1, infeatures) @ w_deq           # (1, N)
        np.testing.assert_allclose(np.asarray(y).reshape(1, outfeatures),
                                   np.asarray(y_ref), rtol=rtol, atol=atol)

    key = jax.random.PRNGKey(0)
    k_a, k_b = jax.random.split(key)

    # Small shape (single K-chunk, single N-tile), f32 path, tight tolerance.
    run_case(k_a, 128, 256, faster=False, rtol=2e-3, atol=2e-3)
    # Larger shape exercising multi-K-chunk accumulation + multi-N-tile grid.
    run_case(k_b, 2048, 1024, faster=False, rtol=2e-3, atol=2e-2)
    # bf16 ("faster") path, loose tolerance (half-precision activations).
    run_case(k_a, 128, 256, faster=True, rtol=3e-2, atol=1.5)

    print("KERNEL_OK")
</pallas_src>

<mosaic_0001>
module attributes {stable_mosaic.version = 11 : i64} {
  func.func @_quant3_matvec_kernel(%arg0: i32, %arg1: i32, %arg2: memref<1x1x128xf32, #tpu.memory_space<vmem>>, %arg3: memref<3x4x256xi32, #tpu.memory_space<vmem>>, %arg4: memref<1x256xf32, #tpu.memory_space<vmem>>, %arg5: memref<1x256xf32, #tpu.memory_space<vmem>>, %arg6: memref<1x256xf32, #tpu.memory_space<vmem>>, %arg7: memref<1x256xf32, #tpu.memory_space<vmem>>) attributes {dimension_semantics = [#tpu.dimension_semantics<parallel>, #tpu.dimension_semantics<arbitrary>], iteration_bounds = array<i64: 1, 1>, scalar_prefetch = 0 : i64, scratch_operands = 1 : i64, tpu.core_type = #tpu.core_type<tc>, window_params = [{transform_indices = @transform_0, window_bounds = array<i64: 1, 1, 128>}, {transform_indices = @transform_1, window_bounds = array<i64: 3, 4, 256>}, {transform_indices = @transform_2, window_bounds = array<i64: 1, 256>}, {transform_indices = @transform_3, window_bounds = array<i64: 1, 256>}, {transform_indices = @transform_4, window_bounds = array<i64: 1, 256>}]} {
    %c0_i32 = arith.constant 0 : i32
    %0 = arith.cmpi eq, %arg1, %c0_i32 : i32
    %1 = arith.extui %0 : i1 to i32
    %c0_i32_0 = arith.constant 0 : i32
    %2 = arith.cmpi ne, %1, %c0_i32_0 : i32
    scf.if %2 {
      %cst_53 = arith.constant 0.000000e+00 : f32
      %160 = vector.broadcast %cst_53 : f32 to vector<1x256xf32>
      %c0_54 = arith.constant 0 : index
      %c0_55 = arith.constant 0 : index
      %161 = vector.load %arg7[%c0_54, %c0_55] : memref<1x256xf32, #tpu.memory_space<vmem>>, vector<1x256xf32>
      tpu.vector_store %arg7[%c0_54, %c0_55], %160 {strides = array<i32>} : memref<1x256xf32, #tpu.memory_space<vmem>>, vector<1x256xf32>,
    } else {
    }
    %c0 = arith.constant 0 : index
    %c0_1 = arith.constant 0 : index
    %c0_2 = arith.constant 0 : index
    %3 = vector.load %arg3[%c0, %c0_1, %c0_2] : memref<3x4x256xi32, #tpu.memory_space<vmem>>, vector<1x4x256xi32>
    %4 = vector.shape_cast %3 : vector<1x4x256xi32> to vector<4x256xi32>
    %c1 = arith.constant 1 : index
    %c0_3 = arith.constant 0 : index
    %c0_4 = arith.constant 0 : index
    %5 = vector.load %arg3[%c1, %c0_3, %c0_4] : memref<3x4x256xi32, #tpu.memory_space<vmem>>, vector<1x4x256xi32>
    %6 = vector.shape_cast %5 : vector<1x4x256xi32> to vector<4x256xi32>
    %c2 = arith.constant 2 : index
    %c0_5 = arith.constant 0 : index
    %c0_6 = arith.constant 0 : index
    %7 = vector.load %arg3[%c2, %c0_5, %c0_6] : memref<3x4x256xi32, #tpu.memory_space<vmem>>, vector<1x4x256xi32>
    %8 = vector.shape_cast %7 : vector<1x4x256xi32> to vector<4x256xi32>
    %c0_i32_7 = arith.constant 0 : i32
    %9 = vector.broadcast %c0_i32_7 : i32 to vector<4x256xi32>
    %10 = arith.shrsi %4, %9 : vector<4x256xi32>
    %c7_i32 = arith.constant 7 : i32
    %11 = vector.broadcast %c7_i32 : i32 to vector<4x256xi32>
    %12 = arith.andi %10, %11 : vector<4x256xi32>
    %c3_i32 = arith.constant 3 : i32
    %13 = vector.broadcast %c3_i32 : i32 to vector<4x256xi32>
    %14 = arith.shrsi %4, %13 : vector<4x256xi32>
    %c7_i32_8 = arith.constant 7 : i32
    %15 = vector.broadcast %c7_i32_8 : i32 to vector<4x256xi32>
    %16 = arith.andi %14, %15 : vector<4x256xi32>
    %c6_i32 = arith.constant 6 : i32
    %17 = vector.broadcast %c6_i32 : i32 to vector<4x256xi32>
    %18 = arith.shrsi %4, %17 : vector<4x256xi32>
    %c7_i32_9 = arith.constant 7 : i32
    %19 = vector.broadcast %c7_i32_9 : i32 to vector<4x256xi32>
    %20 = arith.andi %18, %19 : vector<4x256xi32>
    %c9_i32 = arith.constant 9 : i32
    %21 = vector.broadcast %c9_i32 : i32 to vector<4x256xi32>
    %22 = arith.shrsi %4, %21 : vector<4x256xi32>
    %c7_i32_10 = arith.constant 7 : i32
    %23 = vector.broadcast %c7_i32_10 : i32 to vector<4x256xi32>
    %24 = arith.andi %22, %23 : vector<4x256xi32>
    %c12_i32 = arith.constant 12 : i32
    %25 = vector.broadcast %c12_i32 : i32 to vector<4x256xi32>
    %26 = arith.shrsi %4, %25 : vector<4x256xi32>
    %c7_i32_11 = arith.constant 7 : i32
    %27 = vector.broadcast %c7_i32_11 : i32 to vector<4x256xi32>
    %28 = arith.andi %26, %27 : vector<4x256xi32>
    %c15_i32 = arith.constant 15 : i32
    %29 = vector.broadcast %c15_i32 : i32 to vector<4x256xi32>
    %30 = arith.shrsi %4, %29 : vector<4x256xi32>
    %c7_i32_12 = arith.constant 7 : i32
    %31 = vector.broadcast %c7_i32_12 : i32 to vector<4x256xi32>
    %32 = arith.andi %30, %31 : vector<4x256xi32>
    %c18_i32 = arith.constant 18 : i32
    %33 = vector.broadcast %c18_i32 : i32 to vector<4x256xi32>
    %34 = arith.shrsi %4, %33 : vector<4x256xi32>
    %c7_i32_13 = arith.constant 7 : i32
    %35 = vector.broadcast %c7_i32_13 : i32 to vector<4x256xi32>
    %36 = arith.andi %34, %35 : vector<4x256xi32>
    %c21_i32 = arith.constant 21 : i32
    %37 = vector.broadcast %c21_i32 : i32 to vector<4x256xi32>
    %38 = arith.shrsi %4, %37 : vector<4x256xi32>
    %c7_i32_14 = arith.constant 7 : i32
    %39 = vector.broadcast %c7_i32_14 : i32 to vector<4x256xi32>
    %40 = arith.andi %38, %39 : vector<4x256xi32>
    %c24_i32 = arith.constant 24 : i32
    %41 = vector.broadcast %c24_i32 : i32 to vector<4x256xi32>
    %42 = arith.shrsi %4, %41 : vector<4x256xi32>
    %c7_i32_15 = arith.constant 7 : i32
    %43 = vector.broadcast %c7_i32_15 : i32 to vector<4x256xi32>
    %44 = arith.andi %42, %43 : vector<4x256xi32>
    %c27_i32 = arith.constant 27 : i32
    %45 = vector.broadcast %c27_i32 : i32 to vector<4x256xi32>
    %46 = arith.shrsi %4, %45 : vector<4x256xi32>
    %c7_i32_16 = arith.constant 7 : i32
    %47 = vector.broadcast %c7_i32_16 : i32 to vector<4x256xi32>
    %48 = arith.andi %46, %47 : vector<4x256xi32>
    %c30_i32 = arith.constant 30 : i32
    %49 = vector.broadcast %c30_i32 : i32 to vector<4x256xi32>
    %50 = arith.shrsi %4, %49 : vector<4x256xi32>
    %c3_i32_17 = arith.constant 3 : i32
    %51 = vector.broadcast %c3_i32_17 : i32 to vector<4x256xi32>
    %52 = arith.andi %50, %51 : vector<4x256xi32>
    %c1_i32 = arith.constant 1 : i32
    %53 = vector.broadcast %c1_i32 : i32 to vector<4x256xi32>
    %54 = arith.andi %6, %53 : vector<4x256xi32>
    %c2_i32 = arith.constant 2 : i32
    %55 = vector.broadcast %c2_i32 : i32 to vector<4x256xi32>
    %56 = arith.shli %54, %55 : vector<4x256xi32>
    %57 = arith.ori %52, %56 : vector<4x256xi32>
    %c1_i32_18 = arith.constant 1 : i32
    %58 = vector.broadcast %c1_i32_18 : i32 to vector<4x256xi32>
    %59 = arith.shrsi %6, %58 : vector<4x256xi32>
    %c7_i32_19 = arith.constant 7 : i32
    %60 = vector.broadcast %c7_i32_19 : i32 to vector<4x256xi32>
    %61 = arith.andi %59, %60 : vector<4x256xi32>
    %c4_i32 = arith.constant 4 : i32
    %62 = vector.broadcast %c4_i32 : i32 to vector<4x256xi32>
    %63 = arith.shrsi %6, %62 : vector<4x256xi32>
    %c7_i32_20 = arith.constant 7 : i32
    %64 = vector.broadcast %c7_i32_20 : i32 to vector<4x256xi32>
    %65 = arith.andi %63, %64 : vector<4x256xi32>
    %c7_i32_21 = arith.constant 7 : i32
    %66 = vector.broadcast %c7_i32_21 : i32 to vector<4x256xi32>
    %67 = arith.shrsi %6, %66 : vector<4x256xi32>
    %c7_i32_22 = arith.constant 7 : i32
    %68 = vector.broadcast %c7_i32_22 : i32 to vector<4x256xi32>
    %69 = arith.andi %67, %68 : vector<4x256xi32>
    %c10_i32 = arith.constant 10 : i32
    %70 = vector.broadcast %c10_i32 : i32 to vector<4x256xi32>
    %71 = arith.shrsi %6, %70 : vector<4x256xi32>
    %c7_i32_23 = arith.constant 7 : i32
    %72 = vector.broadcast %c7_i32_23 : i32 to vector<4x256xi32>
    %73 = arith.andi %71, %72 : vector<4x256xi32>
    %c13_i32 = arith.constant 13 : i32
    %74 = vector.broadcast %c13_i32 : i32 to vector<4x256xi32>
    %75 = arith.shrsi %6, %74 : vector<4x256xi32>
    %c7_i32_24 = arith.constant 7 : i32
    %76 = vector.broadcast %c7_i32_24 : i32 to vector<4x256xi32>
    %77 = arith.andi %75, %76 : vector<4x256xi32>
    %c16_i32 = arith.constant 16 : i32
    %78 = vector.broadcast %c16_i32 : i32 to vector<4x256xi32>
    %79 = arith.shrsi %6, %78 : vector<4x256xi32>
    %c7_i32_25 = arith.constant 7 : i32
    %80 = vector.broadcast %c7_i32_25 : i32 to vector<4x256xi32>
    %81 = arith.andi %79, %80 : vector<4x256xi32>
    %c19_i32 = arith.constant 19 : i32
    %82 = vector.broadcast %c19_i32 : i32 to vector<4x256xi32>
    %83 = arith.shrsi %6, %82 : vector<4x256xi32>
    %c7_i32_26 = arith.constant 7 : i32
    %84 = vector.broadcast %c7_i32_26 : i32 to vector<4x256xi32>
    %85 = arith.andi %83, %84 : vector<4x256xi32>
    %c22_i32 = arith.constant 22 : i32
    %86 = vector.broadcast %c22_i32 : i32 to vector<4x256xi32>
    %87 = arith.shrsi %6, %86 : vector<4x256xi32>
    %c7_i32_27 = arith.constant 7 : i32
    %88 = vector.broadcast %c7_i32_27 : i32 to vector<4x256xi32>
    %89 = arith.andi %87, %88 : vector<4x256xi32>
    %c25_i32 = arith.constant 25 : i32
    %90 = vector.broadcast %c25_i32 : i32 to vector<4x256xi32>
    %91 = arith.shrsi %6, %90 : vector<4x256xi32>
    %c7_i32_28 = arith.constant 7 : i32
    %92 = vector.broadcast %c7_i32_28 : i32 to vector<4x256xi32>
    %93 = arith.andi %91, %92 : vector<4x256xi32>
    %c28_i32 = arith.constant 28 : i32
    %94 = vector.broadcast %c28_i32 : i32 to vector<4x256xi32>
    %95 = arith.shrsi %6, %94 : vector<4x256xi32>
    %c7_i32_29 = arith.constant 7 : i32
    %96 = vector.broadcast %c7_i32_29 : i32 to vector<4x256xi32>
    %97 = arith.andi %95, %96 : vector<4x256xi32>
    %c31_i32 = arith.constant 31 : i32
    %98 = vector.broadcast %c31_i32 : i32 to vector<4x256xi32>
    %99 = arith.shrsi %6, %98 : vector<4x256xi32>
    %c1_i32_30 = arith.constant 1 : i32
    %100 = vector.broadcast %c1_i32_30 : i32 to vector<4x256xi32>
    %101 = arith.andi %99, %100 : vector<4x256xi32>
    %c3_i32_31 = arith.constant 3 : i32
    %102 = vector.broadcast %c3_i32_31 : i32 to vector<4x256xi32>
    %103 = arith.andi %8, %102 : vector<4x256xi32>
    %c1_i32_32 = arith.constant 1 : i32
    %104 = vector.broadcast %c1_i32_32 : i32 to vector<4x256xi32>
    %105 = arith.shli %103, %104 : vector<4x256xi32>
    %106 = arith.ori %101, %105 : vector<4x256xi32>
    %c2_i32_33 = arith.constant 2 : i32
    %107 = vector.broadcast %c2_i32_33 : i32 to vector<4x256xi32>
    %108 = arith.shrsi %8, %107 : vector<4x256xi32>
    %c7_i32_34 = arith.constant 7 : i32
    %109 = vector.broadcast %c7_i32_34 : i32 to vector<4x256xi32>
    %110 = arith.andi %108, %109 : vector<4x256xi32>
    %c5_i32 = arith.constant 5 : i32
    %111 = vector.broadcast %c5_i32 : i32 to vector<4x256xi32>
    %112 = arith.shrsi %8, %111 : vector<4x256xi32>
    %c7_i32_35 = arith.constant 7 : i32
    %113 = vector.broadcast %c7_i32_35 : i32 to vector<4x256xi32>
    %114 = arith.andi %112, %113 : vector<4x256xi32>
    %c8_i32 = arith.constant 8 : i32
    %115 = vector.broadcast %c8_i32 : i32 to vector<4x256xi32>
    %116 = arith.shrsi %8, %115 : vector<4x256xi32>
    %c7_i32_36 = arith.constant 7 : i32
    %117 = vector.broadcast %c7_i32_36 : i32 to vector<4x256xi32>
    %118 = arith.andi %116, %117 : vector<4x256xi32>
    %c11_i32 = arith.constant 11 : i32
    %119 = vector.broadcast %c11_i32 : i32 to vector<4x256xi32>
    %120 = arith.shrsi %8, %119 : vector<4x256xi32>
    %c7_i32_37 = arith.constant 7 : i32
    %121 = vector.broadcast %c7_i32_37 : i32 to vector<4x256xi32>
    %122 = arith.andi %120, %121 : vector<4x256xi32>
    %c14_i32 = arith.constant 14 : i32
    %123 = vector.broadcast %c14_i32 : i32 to vector<4x256xi32>
    %124 = arith.shrsi %8, %123 : vector<4x256xi32>
    %c7_i32_38 = arith.constant 7 : i32
    %125 = vector.broadcast %c7_i32_38 : i32 to vector<4x256xi32>
    %126 = arith.andi %124, %125 : vector<4x256xi32>
    %c17_i32 = arith.constant 17 : i32
    %127 = vector.broadcast %c17_i32 : i32 to vector<4x256xi32>
    %128 = arith.shrsi %8, %127 : vector<4x256xi32>
    %c7_i32_39 = arith.constant 7 : i32
    %129 = vector.broadcast %c7_i32_39 : i32 to vector<4x256xi32>
    %130 = arith.andi %128, %129 : vector<4x256xi32>
    %c20_i32 = arith.constant 20 : i32
    %131 = vector.broadcast %c20_i32 : i32 to vector<4x256xi32>
    %132 = arith.shrsi %8, %131 : vector<4x256xi32>
    %c7_i32_40 = arith.constant 7 : i32
    %133 = vector.broadcast %c7_i32_40 : i32 to vector<4x256xi32>
    %134 = arith.andi %132, %133 : vector<4x256xi32>
    %c23_i32 = arith.constant 23 : i32
    %135 = vector.broadcast %c23_i32 : i32 to vector<4x256xi32>
    %136 = arith.shrsi %8, %135 : vector<4x256xi32>
    %c7_i32_41 = arith.constant 7 : i32
    %137 = vector.broadcast %c7_i32_41 : i32 to vector<4x256xi32>
    %138 = arith.andi %136, %137 : vector<4x256xi32>
    %c26_i32 = arith.constant 26 : i32
    %139 = vector.broadcast %c26_i32 : i32 to vector<4x256xi32>
    %140 = arith.shrsi %8, %139 : vector<4x256xi32>
    %c7_i32_42 = arith.constant 7 : i32
    %141 = vector.broadcast %c7_i32_42 : i32 to vector<4x256xi32>
    %142 = arith.andi %140, %141 : vector<4x256xi32>
    %c29_i32 = arith.constant 29 : i32
    %143 = vector.broadcast %c29_i32 : i32 to vector<4x256xi32>
    %144 = arith.shrsi %8, %143 : vector<4x256xi32>
    %c7_i32_43 = arith.constant 7 : i32
    %145 = vector.broadcast %c7_i32_43 : i32 to vector<4x256xi32>
    %146 = arith.andi %144, %145 : vector<4x256xi32>
    %147 = tpu.concatenate %12, %16, %20, %24, %28, %32, %36, %40, %44, %48, %57, %61, %65, %69, %73, %77 in 0 : vector<4x256xi32>, vector<4x256xi32>, vector<4x256xi32>, vector<4x256xi32>, vector<4x256xi32>, vector<4x256xi32>, vector<4x256xi32>, vector<4x256xi32>, vector<4x256xi32>, vector<4x256xi32>, vector<4x256xi32>, vector<4x256xi32>, vector<4x256xi32>, vector<4x256xi32>, vector<4x256xi32>, vector<4x256xi32> -> vector<64x256xi32>
    %148 = tpu.concatenate %81, %85, %89, %93, %97, %106, %110, %114, %118, %122, %126, %130, %134, %138, %142, %146 in 0 : vector<4x256xi32>, vector<4x256xi32>, vector<4x256xi32>, vector<4x256xi32>, vector<4x256xi32>, vector<4x256xi32>, vector<4x256xi32>, vector<4x256xi32>, vector<4x256xi32>, vector<4x256xi32>, vector<4x256xi32>, vector<4x256xi32>, vector<4x256xi32>, vector<4x256xi32>, vector<4x256xi32>, vector<4x256xi32> -> vector<64x256xi32>
    %149 = tpu.concatenate %147, %148 in 0 : vector<64x256xi32>, vector<64x256xi32> -> vector<128x256xi32>
    %150 = arith.sitofp %149 : vector<128x256xi32> to vector<128x256xf32>
    %c0_44 = arith.constant 0 : index
    %c0_45 = arith.constant 0 : index
    %c0_46 = arith.constant 0 : index
    %151 = vector.load %arg2[%c0_44, %c0_45, %c0_46] : memref<1x1x128xf32, #tpu.memory_space<vmem>>, vector<1x1x128xf32>
    %152 = vector.shape_cast %151 : vector<1x1x128xf32> to vector<1x128xf32>
    %c0_47 = arith.constant 0 : index
    %c0_48 = arith.constant 0 : index
    %153 = vector.load %arg7[%c0_47, %c0_48] : memref<1x256xf32, #tpu.memory_space<vmem>>, vector<1x256xf32>
    %cst = arith.constant dense<0.000000e+00> : vector<1x256xf32>
    %154 = tpu.matmul %152, %150, %cst {dimension_numbers = #tpu.dot_dimension_numbers<[1], [0], [0], [1], [0, 0, 1, 1], [], []>} : vector<1x128xf32>, vector<128x256xf32>, vector<1x256xf32> -> vector<1x256xf32>
    %155 = arith.addf %153, %154 : vector<1x256xf32>
    %c0_49 = arith.constant 0 : index
    %c0_50 = arith.constant 0 : index
    %156 = vector.load %arg7[%c0_49, %c0_50] : memref<1x256xf32, #tpu.memory_space<vmem>>, vector<1x256xf32>
    tpu.vector_store %arg7[%c0_49, %c0_50], %155 {strides = array<i32>} : memref<1x256xf32, #tpu.memory_space<vmem>>, vector<1x256xf32>,
    %c0_i32_51 = arith.constant 0 : i32
    %157 = arith.cmpi eq, %arg1, %c0_i32_51 : i32
    %158 = arith.extui %157 : i1 to i32
    %c0_i32_52 = arith.constant 0 : i32
    %159 = arith.cmpi ne, %158, %c0_i32_52 : i32
    scf.if %159 {
      %c0_53 = arith.constant 0 : index
      %c0_54 = arith.constant 0 : index
      %160 = vector.load %arg4[%c0_53, %c0_54] : memref<1x256xf32, #tpu.memory_space<vmem>>, vector<1x256xf32>
      %c0_55 = arith.constant 0 : index
      %c0_56 = arith.constant 0 : index
      %161 = vector.load %arg7[%c0_55, %c0_56] : memref<1x256xf32, #tpu.memory_space<vmem>>, vector<1x256xf32>
      %162 = arith.mulf %160, %161 : vector<1x256xf32>
      %c0_57 = arith.constant 0 : index
      %c0_58 = arith.constant 0 : index
      %163 = vector.load %arg5[%c0_57, %c0_58] : memref<1x256xf32, #tpu.memory_space<vmem>>, vector<1x256xf32>
      %164 = arith.addf %162, %163 : vector<1x256xf32>
      %c0_59 = arith.constant 0 : index
      %c0_60 = arith.constant 0 : index
      %165 = vector.load %arg6[%c0_59, %c0_60] : memref<1x256xf32, #tpu.memory_space<vmem>>, vector<1x256xf32>
      tpu.vector_store %arg6[%c0_59, %c0_60], %164 {strides = array<i32>} : memref<1x256xf32, #tpu.memory_space<vmem>>, vector<1x256xf32>,
    } else {
    }
    return
  }
  func.func @transform_0(%arg0: i32, %arg1: i32) -> (i32, i32, i32) {
    %c0_i32 = arith.constant 0 : i32
    %c0_i32_0 = arith.constant 0 : i32
    %c0_i32_1 = arith.constant 0 : i32
    return %arg1, %c0_i32, %c0_i32_0 : i32, i32, i32
  }
  func.func @transform_1(%arg0: i32, %arg1: i32) -> (i32, i32, i32) {
    %c0_i32 = arith.constant 0 : i32
    %c0_i32_0 = arith.constant 0 : i32
    return %c0_i32, %arg1, %arg0 : i32, i32, i32
  }
  func.func @transform_2(%arg0: i32, %arg1: i32) -> (i32, i32) {
    %c0_i32 = arith.constant 0 : i32
    %c0_i32_0 = arith.constant 0 : i32
    return %c0_i32, %arg0 : i32, i32
  }
  func.func @transform_3(%arg0: i32, %arg1: i32) -> (i32, i32) {
    %c0_i32 = arith.constant 0 : i32
    %c0_i32_0 = arith.constant 0 : i32
    return %c0_i32, %arg0 : i32, i32
  }
  func.func @transform_4(%arg0: i32, %arg1: i32) -> (i32, i32) {
    %c0_i32 = arith.constant 0 : i32
    %c0_i32_0 = arith.constant 0 : i32
    return %c0_i32, %arg0 : i32, i32
  }
}

</mosaic_0001>

<llo_original>
// kernel: tpu_custom_call.1
$region0: #{tpu_custom_call.1}
  #allocation0 [shape = 'u32[]', space=smem, size = 0x4, offset = 0x4, fixed_abs, tag = 'smem constant byte address 0x4 - core index']
  #allocation1 [shape = 'u32[72,128]{1,0:T(1,128)}', space=vmem, size = 0x9000, scoped, tag = 'internal scratch']
  #allocation2 [shape = 'f32[1,256]{1,0:T(1,128)}', space=vmem, size = 0x400, scoped, tag = 'scratch operand']
  %s0 = inlined_call_operand.hbm [shape: f32[1,1,128], index: 0, kind: input, shape index: {}]
  %s1 = inlined_call_operand.hbm [shape: s32[3,4,256], index: 1, kind: input, shape index: {}]
  %s2 = inlined_call_operand.hbm [shape: f32[1,256], index: 2, kind: input, shape index: {}]
  %s3 = inlined_call_operand.vmem [shape: f32[1,256], index: 3, kind: input, shape index: {}]
  %s4 = inlined_call_operand.hbm [shape: f32[1,256], index: 4, kind: output, shape index: {}]
  %s5 = sld [smem:[#allocation0]]
  $region46: #{tpu_custom_call.1} parent=0
    _
  %s7 = ssub.s32 1, %s5
  %s8 = scalar_select 0, %s7, %s5
  $region1: #{tpu_custom_call.1} parent=0
    #allocation3 [shape = 'u8[512]{0}', space=vmem, size = 0x400, scoped, tag = 'input window, operand 0, single buffered']
    #allocation4 [shape = 's32[1]{0}', space=sflag, size = 0x4, scoped, tag = 'scoped memory for tpu_custom_call.1']
    #allocation5 [shape = 's32[1]{0}', space=sflag, size = 0x4, scoped, tag = 'scoped memory for tpu_custom_call.1']
    #allocation6 [shape = 'u8[12288]{0}', space=vmem, size = 0x3000, scoped, tag = 'input window, operand 1, single buffered']
    #allocation7 [shape = 's32[1]{0}', space=sflag, size = 0x4, scoped, tag = 'scoped memory for tpu_custom_call.1']
    #allocation8 [shape = 'u8[1024]{0}', space=vmem, size = 0x400, scoped, tag = 'input window, operand 2, single buffered']
    #allocation9 [shape = 'u8[1024]{0}', space=vmem, size = 0x400, scoped, tag = 'output window, operand 0, single buffered']
    %9 = vsyncpa [#allocation4], 0
    %10 = vsyncpa [#allocation7], 0
    %11 = vsyncpa [#allocation5], 0
    // Predicated region
    $region2: #{tpu_custom_call.1} parent=1 // pred_check
      _
    $region3: #{tpu_custom_call.1} parent=1 // pred_check_branch
      %13 = sbr.rel (0) target = $region5
    $region4: #{tpu_custom_call.1} parent=1 // pred_region
      %15 = vsyncadd [#allocation4], 0
      %s17 = sshll.u32 %s0, 4
      %s18 = int_to_ptr.hbm [resolvable:$true] %s17
      %s19 = sshll.u32 [#allocation3], 4
      %s20 = int_to_ptr.vmem [resolvable:$true] %s19
      %22 = dma.hbm_to_vmem [thread:$0]  %s18, 16, %s20, [#allocation4]
    $region5: #{tpu_custom_call.1} parent=1 // pred_fallthru
      _
    // Predicated region
    $region6: #{tpu_custom_call.1} parent=1 // pred_check
      _
    $region7: #{tpu_custom_call.1} parent=1 // pred_check_branch
      %24 = sbr.rel (0) target = $region9
    $region8: #{tpu_custom_call.1} parent=1 // pred_region
      %26 = vsyncadd [#allocation7], 0
      %s27 = sshll.u32 %s1, 4
      %s28 = int_to_ptr.hbm [resolvable:$true] %s27
      %s29 = sshll.u32 [#allocation6], 4
      %s30 = int_to_ptr.vmem [resolvable:$true] %s29
      %35 = dma.hbm_to_vmem [thread:$0]  %s28, 384, %s30, [#allocation7], 128, 128, 8
    $region9: #{tpu_custom_call.1} parent=1 // pred_fallthru
      _
    // Predicated region
    $region10: #{tpu_custom_call.1} parent=1 // pred_check
      _
    $region11: #{tpu_custom_call.1} parent=1 // pred_check_branch
      %37 = sbr.rel (0) target = $region13
    $region12: #{tpu_custom_call.1} parent=1 // pred_region
      %39 = vsyncadd [#allocation7], 0
      %s41 = sshll.u32 %s2, 4
      %s42 = int_to_ptr.hbm [resolvable:$true] %s41
      %s43 = sshll.u32 [#allocation8], 4
      %s44 = int_to_ptr.vmem [resolvable:$true] %s43
      %46 = dma.hbm_to_vmem [thread:$0]  %s42, 32, %s44, [#allocation7]
    $region13: #{tpu_custom_call.1} parent=1 // pred_fallthru
      _
    // Predicated region
    $region14: #{tpu_custom_call.1} parent=1 // pred_check
      _
    $region15: #{tpu_custom_call.1} parent=1 // pred_check_branch
      %48 = sbr.rel (0) target = $region17
    $region16: #{tpu_custom_call.1} parent=1 // pred_region
      _
    $region17: #{tpu_custom_call.1} parent=1 // pred_fallthru
      _
    // Predicated region
    $region18: #{tpu_custom_call.1} parent=1 // pred_check
      _
    $region19: #{tpu_custom_call.1} parent=1 // pred_check_branch
      %50 = sbr.rel (0) target = $region21
    $region20: #{tpu_custom_call.1} parent=1 // pred_region
      %52 = dma.done [#allocation4], 16
    $region21: #{tpu_custom_call.1} parent=1 // pred_fallthru
      _
    // Predicated region
    $region22: #{tpu_custom_call.1} parent=1 // pred_check
      _
    $region23: #{tpu_custom_call.1} parent=1 // pred_check_branch
      %54 = sbr.rel (0) target = $region25
    $region24: #{tpu_custom_call.1} parent=1 // pred_region
      %56 = dma.done [#allocation7], 384
    $region25: #{tpu_custom_call.1} parent=1 // pred_fallthru
      _
    // Predicated region
    $region26: #{tpu_custom_call.1} parent=1 // pred_check
      _
    $region27: #{tpu_custom_call.1} parent=1 // pred_check_branch
      %58 = sbr.rel (0) target = $region29
    $region28: #{tpu_custom_call.1} parent=1 // pred_region
      %60 = dma.done [#allocation7], 32
    $region29: #{tpu_custom_call.1} parent=1 // pred_fallthru
      _
    %p61 = scmp.eq.s32.totalorder 0, 0
    // Predicated region
    $region30: #{tpu_custom_call.1} parent=1 // pred_check
      %p62 = pneg %p61
    $region31: #{tpu_custom_call.1} parent=1 // pred_check_branch
      %64 = sbr.rel (%p62) target = $region33
    $region32: #{tpu_custom_call.1} parent=1 // pred_region
      %v65 = vlaneseq
      %vm66 = vcmp.ge.s32.totalorder %v65, 0
      %vm67 = vcmp.lt.s32.totalorder %v65, 256
      %vm68 = vmand %vm66, %vm67
      %69 = vst.msk [vmem:[#allocation2] sm:$0x3] %vm68, 0.0
    $region33: #{tpu_custom_call.1} parent=1 // pred_fallthru
      _
    %v70 = vld [vmem:[#allocation6] sm:$0xff]
    %s71 = scalar_lea.vmem [#allocation6], 8
    %v72 = vld [vmem:[%s71] sm:$0xff]
    %s73 = scalar_lea.vmem [#allocation6], 16
    %v74 = vld [vmem:[%s73] sm:$0xff]
    %v75 = vand.u32 %v70, 7
    %v76 = vshra.s32 %v70, 3
    %v77 = vand.u32 %v76, 7
    %v78 = vshra.s32 %v70, 6
    %v79 = vand.u32 %v78, 7
    %v80 = vshra.s32 %v70, 9
    %v81 = vand.u32 %v80, 7
    %v82 = vshra.s32 %v70, 12
    %v83 = vand.u32 %v82, 7
    %v84 = vshra.s32 %v70, 15
    %v85 = vand.u32 %v84, 7
    %v86 = vshra.s32 %v70, 18
    %v87 = vand.u32 %v86, 7
    %v88 = vshra.s32 %v70, 21
    %v89 = vand.u32 %v88, 7
    %v90 = vshra.s32 %v70, 24
    %v91 = vand.u32 %v90, 7
    %v92 = vshra.s32 %v70, 27
    %v93 = vand.u32 %v92, 7
    %v94 = vshra.s32 %v70, 30
    %v95 = vand.u32 %v94, 3
    %v96 = vand.u32 %v72, 1
    %v97 = vshll.u32 %v96, 2
    %v98 = vor.u32 %v95, %v97
    %v99 = vshra.s32 %v72, 1
    %v100 = vand.u32 %v99, 7
    %v101 = vshra.s32 %v72, 4
    %v102 = vand.u32 %v101, 7
    %v103 = vshra.s32 %v72, 7
    %v104 = vand.u32 %v103, 7
    %v105 = vshra.s32 %v72, 10
    %v106 = vand.u32 %v105, 7
    %v107 = vshra.s32 %v72, 13
    %v108 = vand.u32 %v107, 7
    %v109 = vshra.s32 %v72, 16
    %v110 = vand.u32 %v109, 7
    %v111 = vshra.s32 %v72, 19
    %v112 = vand.u32 %v111, 7
    %v113 = vshra.s32 %v72, 22
    %v114 = vand.u32 %v113, 7
    %v115 = vshra.s32 %v72, 25
    %v116 = vand.u32 %v115, 7
    %v117 = vshra.s32 %v72, 28
    %v118 = vand.u32 %v117, 7
    %v119 = vshra.s32 %v72, 31
    %v120 = vand.u32 %v119, 1
    %v121 = vand.u32 %v74, 3
    %v122 = vshll.u32 %v121, 1
    %v123 = vor.u32 %v120, %v122
    %v124 = vshra.s32 %v74, 2
    %v125 = vand.u32 %v124, 7
    %v126 = vshra.s32 %v74, 5
    %v127 = vand.u32 %v126, 7
    %v128 = vshra.s32 %v74, 8
    %v129 = vand.u32 %v128, 7
    %v130 = vshra.s32 %v74, 11
    %v131 = vand.u32 %v130, 7
    %v132 = vshra.s32 %v74, 14
    %v133 = vand.u32 %v132, 7
    %v134 = vshra.s32 %v74, 17
    %v135 = vand.u32 %v134, 7
    %v136 = vshra.s32 %v74, 20
    %v137 = vand.u32 %v136, 7
    %v138 = vshra.s32 %v74, 23
    %v139 = vand.u32 %v138, 7
    %v140 = vshra.s32 %v74, 26
    %v141 = vand.u32 %v140, 7
    %v142 = vshra.s32 %v74, 29
    %v143 = vand.u32 %v142, 7
    %144 = vst [vmem:[#allocation1] ss:$2 sm:$0xff] %v75
    %v145 = vld.sshfl [vmem:[#allocation1] sm:$0xff pattern:$0x75316420]
    %v146 = vld.sshfl [vmem:[#allocation1 + $0x8] sm:$0xff pattern:$0x75316420]
    %s147 = scalar_lea.vmem [#allocation1], 1
    %148 = vst [vmem:[%s147] ss:$2 sm:$0xff] %v77
    %v149 = vld.sshfl [vmem:[#allocation1] sm:$0xff pattern:$0x75316420]
    %v150 = vld.sshfl [vmem:[#allocation1 + $0x8] sm:$0xff pattern:$0x75316420]
    %151 = vst [vmem:[#allocation1] ss:$2 sm:$0xff] %v79
    %v152 = vld.sshfl [vmem:[#allocation1] sm:$0xff pattern:$0x75316420]
    %v153 = vld.sshfl [vmem:[#allocation1 + $0x8] sm:$0xff pattern:$0x75316420]
    %s154 = scalar_lea.vmem [#allocation1], 1
    %155 = vst [vmem:[%s154] ss:$2 sm:$0xff] %v81
    %v156 = vld.sshfl [vmem:[#allocation1] sm:$0xff pattern:$0x75316420]
    %v157 = vld.sshfl [vmem:[#allocation1 + $0x8] sm:$0xff pattern:$0x75316420]
    %158 = vst [vmem:[#allocation1] ss:$2 sm:$0xff] %v83
    %v159 = vld.sshfl [vmem:[#allocation1] sm:$0xff pattern:$0x75316420]
    %v160 = vld.sshfl [vmem:[#allocation1 + $0x8] sm:$0xff pattern:$0x75316420]
    %s161 = scalar_lea.vmem [#allocation1], 1
    %162 = vst [vmem:[%s161] ss:$2 sm:$0xff] %v85
    %v163 = vld.sshfl [vmem:[#allocation1] sm:$0xff pattern:$0x75316420]
    %v164 = vld.sshfl [vmem:[#allocation1 + $0x8] sm:$0xff pattern:$0x75316420]
    %165 = vst [vmem:[#allocation1] ss:$2 sm:$0xff] %v87
    %v166 = vld.sshfl [vmem:[#allocation1] sm:$0xff pattern:$0x75316420]
    %v167 = vld.sshfl [vmem:[#allocation1 + $0x8] sm:$0xff pattern:$0x75316420]
    %s168 = scalar_lea.vmem [#allocation1], 1
    %169 = vst [vmem:[%s168] ss:$2 sm:$0xff] %v89
    %v170 = vld.sshfl [vmem:[#allocation1] sm:$0xff pattern:$0x75316420]
    %v171 = vld.sshfl [vmem:[#allocation1 + $0x8] sm:$0xff pattern:$0x75316420]
    %172 = vst [vmem:[#allocation1] ss:$2 sm:$0xff] %v91
    %v173 = vld.sshfl [vmem:[#allocation1] sm:$0xff pattern:$0x75316420]
    %v174 = vld.sshfl [vmem:[#allocation1 + $0x8] sm:$0xff pattern:$0x75316420]
    %s175 = scalar_lea.vmem [#allocation1], 1
    %176 = vst [vmem:[%s175] ss:$2 sm:$0xff] %v93
    %v177 = vld.sshfl [vmem:[#allocation1] sm:$0xff pattern:$0x75316420]
    %v178 = vld.sshfl [vmem:[#allocation1 + $0x8] sm:$0xff pattern:$0x75316420]
    %179 = vst [vmem:[#allocation1] ss:$2 sm:$0xff] %v98
    %v180 = vld.sshfl [vmem:[#allocation1] sm:$0xff pattern:$0x75316420]
    %v181 = vld.sshfl [vmem:[#allocation1 + $0x8] sm:$0xff pattern:$0x75316420]
    %s182 = scalar_lea.vmem [#allocation1], 1
    %183 = vst [vmem:[%s182] ss:$2 sm:$0xff] %v100
    %v184 = vld.sshfl [vmem:[#allocation1] sm:$0xff pattern:$0x75316420]
    %v185 = vld.sshfl [vmem:[#allocation1 + $0x8] sm:$0xff pattern:$0x75316420]
    %186 = vst [vmem:[#allocation1] ss:$2 sm:$0xff] %v102
    %v187 = vld.sshfl [vmem:[#allocation1] sm:$0xff pattern:$0x75316420]
    %v188 = vld.sshfl [vmem:[#allocation1 + $0x8] sm:$0xff pattern:$0x75316420]
    %s189 = scalar_lea.vmem [#allocation1], 1
    %190 = vst [vmem:[%s189] ss:$2 sm:$0xff] %v104
    %v191 = vld.sshfl [vmem:[#allocation1] sm:$0xff pattern:$0x75316420]
    %v192 = vld.sshfl [vmem:[#allocation1 + $0x8] sm:$0xff pattern:$0x75316420]
    %193 = vst [vmem:[#allocation1] ss:$2 sm:$0xff] %v106
    %v194 = vld.sshfl [vmem:[#allocation1] sm:$0xff pattern:$0x75316420]
    %v195 = vld.sshfl [vmem:[#allocation1 + $0x8] sm:$0xff pattern:$0x75316420]
    %s196 = scalar_lea.vmem [#allocation1], 1
    %197 = vst [vmem:[%s196] ss:$2 sm:$0xff] %v108
    %v198 = vld.sshfl [vmem:[#allocation1] sm:$0xff pattern:$0x75316420]
    %v199 = vld.sshfl [vmem:[#allocation1 + $0x8] sm:$0xff pattern:$0x75316420]
    %vm200 = vcmask 1043456
    %v201 = vsel %vm200, %v145, %v149
    %v202 = vsel %vm200, %v146, %v150
    %v203 = vsel %vm200, %v152, %v156
    %v204 = vsel %vm200, %v153, %v157
    %v205 = vsel %vm200, %v159, %v163
    %v206 = vsel %vm200, %v160, %v164
    %v207 = vsel %vm200, %v166, %v170
    %v208 = vsel %vm200, %v167, %v171
    %v209 = vsel %vm200, %v173, %v177
    %v210 = vsel %vm200, %v174, %v178
    %v211 = vsel %vm200, %v180, %v184
    %v212 = vsel %vm200, %v181, %v185
    %v213 = vsel %vm200, %v187, %v191
    %v214 = vsel %vm200, %v188, %v192
    %v215 = vsel %vm200, %v194, %v198
    %v216 = vsel %vm200, %v195, %v199
    %217 = vst [vmem:[#allocation1] ss:$2 sm:$0xff] %v110
    %v218 = vld.sshfl [vmem:[#allocation1] sm:$0xff pattern:$0x75316420]
    %v219 = vld.sshfl [vmem:[#allocation1 + $0x8] sm:$0xff pattern:$0x75316420]
    %s220 = scalar_lea.vmem [#allocation1], 1
    %221 = vst [vmem:[%s220] ss:$2 sm:$0xff] %v112
    %v222 = vld.sshfl [vmem:[#allocation1] sm:$0xff pattern:$0x75316420]
    %v223 = vld.sshfl [vmem:[#allocation1 + $0x8] sm:$0xff pattern:$0x75316420]
    %224 = vst [vmem:[#allocation1] ss:$2 sm:$0xff] %v114
    %v225 = vld.sshfl [vmem:[#allocation1] sm:$0xff pattern:$0x75316420]
    %v226 = vld.sshfl [vmem:[#allocation1 + $0x8] sm:$0xff pattern:$0x75316420]
    %s227 = scalar_lea.vmem [#allocation1], 1
    %228 = vst [vmem:[%s227] ss:$2 sm:$0xff] %v116
    %v229 = vld.sshfl [vmem:[#allocation1] sm:$0xff pattern:$0x75316420]
    %v230 = vld.sshfl [vmem:[#allocation1 + $0x8] sm:$0xff pattern:$0x75316420]
    %231 = vst [vmem:[#allocation1] ss:$2 sm:$0xff] %v118
    %v232 = vld.sshfl [vmem:[#allocation1] sm:$0xff pattern:$0x75316420]
    %v233 = vld.sshfl [vmem:[#allocation1 + $0x8] sm:$0xff pattern:$0x75316420]
    %s234 = scalar_lea.vmem [#allocation1], 1
    %235 = vst [vmem:[%s234] ss:$2 sm:$0xff] %v123
    %v236 = vld.sshfl [vmem:[#allocation1] sm:$0xff pattern:$0x75316420]
    %v237 = vld.sshfl [vmem:[#allocation1 + $0x8] sm:$0xff pattern:$0x75316420]
    %238 = vst [vmem:[#allocation1] ss:$2 sm:$0xff] %v125
    %v239 = vld.sshfl [vmem:[#allocation1] sm:$0xff pattern:$0x75316420]
    %v240 = vld.sshfl [vmem:[#allocation1 + $0x8] sm:$0xff pattern:$0x75316420]
    %s241 = scalar_lea.vmem [#allocation1], 1
    %242 = vst [vmem:[%s241] ss:$2 sm:$0xff] %v127
    %v243 = vld.sshfl [vmem:[#allocation1] sm:$0xff pattern:$0x75316420]
    %v244 = vld.sshfl [vmem:[#allocation1 + $0x8] sm:$0xff pattern:$0x75316420]
    %245 = vst [vmem:[#allocation1] ss:$2 sm:$0xff] %v129
    %v246 = vld.sshfl [vmem:[#allocation1] sm:$0xff pattern:$0x75316420]
    %v247 = vld.sshfl [vmem:[#allocation1 + $0x8] sm:$0xff pattern:$0x75316420]
    %s248 = scalar_lea.vmem [#allocation1], 1
    %249 = vst [vmem:[%s248] ss:$2 sm:$0xff] %v131
    %v250 = vld.sshfl [vmem:[#allocation1] sm:$0xff pattern:$0x75316420]
    %v251 = vld.sshfl [vmem:[#allocation1 + $0x8] sm:$0xff pattern:$0x75316420]
    %252 = vst [vmem:[#allocation1] ss:$2 sm:$0xff] %v133
    %v253 = vld.sshfl [vmem:[#allocation1] sm:$0xff pattern:$0x75316420]
    %v254 = vld.sshfl [vmem:[#allocation1 + $0x8] sm:$0xff pattern:$0x75316420]
    %s255 = scalar_lea.vmem [#allocation1], 1
    %256 = vst [vmem:[%s255] ss:$2 sm:$0xff] %v135
    %v257 = vld.sshfl [vmem:[#allocation1] sm:$0xff pattern:$0x75316420]
    %v258 = vld.sshfl [vmem:[#allocation1 + $0x8] sm:$0xff pattern:$0x75316420]
    %259 = vst [vmem:[#allocation1] ss:$2 sm:$0xff] %v137
    %v260 = vld.sshfl [vmem:[#allocation1] sm:$0xff pattern:$0x75316420]
    %v261 = vld.sshfl [vmem:[#allocation1 + $0x8] sm:$0xff pattern:$0x75316420]
    %s262 = scalar_lea.vmem [#allocation1], 1
    %263 = vst [vmem:[%s262] ss:$2 sm:$0xff] %v139
    %v264 = vld.sshfl [vmem:[#allocation1] sm:$0xff pattern:$0x75316420]
    %v265 = vld.sshfl [vmem:[#allocation1 + $0x8] sm:$0xff pattern:$0x75316420]
    %266 = vst [vmem:[#allocation1] ss:$2 sm:$0xff] %v141
    %v267 = vld.sshfl [vmem:[#allocation1] sm:$0xff pattern:$0x75316420]
    %v268 = vld.sshfl [vmem:[#allocation1 + $0x8] sm:$0xff pattern:$0x75316420]
    %s269 = scalar_lea.vmem [#allocation1], 1
    %270 = vst [vmem:[%s269] ss:$2 sm:$0xff] %v143
    %v271 = vld.sshfl [vmem:[#allocation1] sm:$0xff pattern:$0x75316420]
    %v272 = vld.sshfl [vmem:[#allocation1 + $0x8] sm:$0xff pattern:$0x75316420]
    %v273 = vsel %vm200, %v218, %v222
    %v274 = vsel %vm200, %v219, %v223
    %v275 = vsel %vm200, %v225, %v229
    %v276 = vsel %vm200, %v226, %v230
    %v277 = vsel %vm200, %v232, %v236
    %v278 = vsel %vm200, %v233, %v237
    %v279 = vsel %vm200, %v239, %v243
    %v280 = vsel %vm200, %v240, %v244
    %v281 = vsel %vm200, %v246, %v250
    %v282 = vsel %vm200, %v247, %v251
    %v283 = vsel %vm200, %v253, %v257
    %v284 = vsel %vm200, %v254, %v258
    %v285 = vsel %vm200, %v260, %v264
    %v286 = vsel %vm200, %v261, %v265
    %v287 = vsel %vm200, %v267, %v271
    %v288 = vsel %vm200, %v268, %v272
    %v289 = vcvt.s32.f32 %v201
    %v290 = vcvt.s32.f32 %v202
    %v291 = vcvt.s32.f32 %v203
    %v292 = vcvt.s32.f32 %v204
    %v293 = vcvt.s32.f32 %v205
    %v294 = vcvt.s32.f32 %v206
    %v295 = vcvt.s32.f32 %v207
    %v296 = vcvt.s32.f32 %v208
    %v297 = vcvt.s32.f32 %v209
    %v298 = vcvt.s32.f32 %v210
    %v299 = vcvt.s32.f32 %v211
    %v300 = vcvt.s32.f32 %v212
    %v301 = vcvt.s32.f32 %v213
    %v302 = vcvt.s32.f32 %v214
    %v303 = vcvt.s32.f32 %v215
    %v304 = vcvt.s32.f32 %v216
    %v305 = vcvt.s32.f32 %v273
    %v306 = vcvt.s32.f32 %v274
    %v307 = vcvt.s32.f32 %v275
    %v308 = vcvt.s32.f32 %v276
    %v309 = vcvt.s32.f32 %v277
    %v310 = vcvt.s32.f32 %v278
    %v311 = vcvt.s32.f32 %v279
    %v312 = vcvt.s32.f32 %v280
    %v313 = vcvt.s32.f32 %v281
    %v314 = vcvt.s32.f32 %v282
    %v315 = vcvt.s32.f32 %v283
    %v316 = vcvt.s32.f32 %v284
    %v317 = vcvt.s32.f32 %v285
    %v318 = vcvt.s32.f32 %v286
    %v319 = vcvt.s32.f32 %v287
    %v320 = vcvt.s32.f32 %v288
    %v321 = vld [vmem:[#allocation3] sm:$0x1]
    %v322 = vld [vmem:[#allocation2] sm:$0x3]
    %323 = vmatpush.msra.mxu0 %v319
    %324 = vmatpush.msra.mxu0 %v317
    %325 = vmatpush.msra.mxu0 %v315
    %326 = vmatpush.msra.mxu0 %v313
    %327 = vmatpush.msra.mxu0 %v311
    %328 = vmatpush.msra.mxu0 %v309
    %329 = vmatpush.msra.mxu0 %v307
    %330 = vmatpush.msra.mxu0 %v305
    %331 = vmatpush.msra.mxu0 %v303
    %332 = vmatpush.msra.mxu0 %v301
    %333 = vmatpush.msra.mxu0 %v299
    %334 = vmatpush.msra.mxu0 %v297
    %335 = vmatpush.msra.mxu0 %v295
    %336 = vmatpush.msra.mxu0 %v293
    %337 = vmatpush.msra.mxu0 %v291
    %338 = vmatpush.msra.mxu0 %v289
    %339 = vmatmul.f32.gmra.mxu0 %v321
    %v340 = vpop.f32.mrf.mxu0
    %v341 = vadd.f32 0.0, %v340
    %342 = vdwg.mxu0
    %343 = vmatpush.msra.mxu0 %v320
    %344 = vmatpush.msra.mxu0 %v318
    %345 = vmatpush.msra.mxu0 %v316
    %346 = vmatpush.msra.mxu0 %v314
    %347 = vmatpush.msra.mxu0 %v312
    %348 = vmatpush.msra.mxu0 %v310
    %349 = vmatpush.msra.mxu0 %v308
    %350 = vmatpush.msra.mxu0 %v306
    %351 = vmatpush.msra.mxu0 %v304
    %352 = vmatpush.msra.mxu0 %v302
    %353 = vmatpush.msra.mxu0 %v300
    %354 = vmatpush.msra.mxu0 %v298
    %355 = vmatpush.msra.mxu0 %v296
    %356 = vmatpush.msra.mxu0 %v294
    %357 = vmatpush.msra.mxu0 %v292
    %358 = vmatpush.msra.mxu0 %v290
    %359 = vmatmul.f32.gmra.mxu0 %v321
    %v360 = vpop.f32.mrf.mxu0
    %v361 = vadd.f32 0.0, %v360
    %362 = vdwg.mxu0
    %v365 = vrot.slane %v361, 7
    %vm366 = vcmask 1040384
    %v367 = vsel %vm366, %v341, %v365
    %v369 = vadd.f32 %v322, %v367
    %v370 = vlaneseq
    %vm371 = vcmp.ge.s32.totalorder %v370, 0
    %vm372 = vcmp.lt.s32.totalorder %v370, 256
    %vm373 = vmand %vm371, %vm372
    %374 = vst.msk [vmem:[#allocation2] sm:$0x3] %vm373, %v369
    // Predicated region
    $region34: #{tpu_custom_call.1} parent=1 // pred_check
      %p375 = pneg %p61
    $region35: #{tpu_custom_call.1} parent=1 // pred_check_branch
      %377 = sbr.rel (%p375) target = $region37
    $region36: #{tpu_custom_call.1} parent=1 // pred_region
      %v378 = vld [vmem:[#allocation8] sm:$0x3]
      %v379 = vld [vmem:[#allocation2] sm:$0x3]
      %v380 = vmul.f32 %v378, %v379
      %v381 = vld [vmem:[%s3] sm:$0x3]
      %v382 = vadd.f32 %v380, %v381
      %383 = vst.msk [vmem:[#allocation9] sm:$0x3] %vm373, %v382
    $region37: #{tpu_custom_call.1} parent=1 // pred_fallthru
      _
    // Predicated region
    $region38: #{tpu_custom_call.1} parent=1 // pred_check
      _
    $region39: #{tpu_custom_call.1} parent=1 // pred_check_branch
      %385 = sbr.rel (0) target = $region41
    $region40: #{tpu_custom_call.1} parent=1 // pred_region
      %387 = vsyncadd [#allocation5], 0
      %s389 = sshll.u32 [#allocation9], 4
      %s390 = int_to_ptr.vmem [resolvable:$true] %s389
      %s391 = sshll.u32 %s4, 4
      %s392 = int_to_ptr.hbm [resolvable:$true] %s391
      %394 = dma.vmem_to_hbm [thread:$0]  %s390, 32, %s392, [#allocation5]
    $region41: #{tpu_custom_call.1} parent=1 // pred_fallthru
      _
    // Predicated region
    $region42: #{tpu_custom_call.1} parent=1 // pred_check
      _
    $region43: #{tpu_custom_call.1} parent=1 // pred_check_branch
      %396 = sbr.rel (0) target = $region45
    $region44: #{tpu_custom_call.1} parent=1 // pred_region
      %398 = dma.done [#allocation5], 32
    $region45: #{tpu_custom_call.1} parent=1 // pred_fallthru
      _
    %399 = vsyncpa [#allocation4], 1
    %400 = vsyncpa [#allocation7], 1
    %401 = vsyncpa [#allocation5], 1

</llo_original>
